<compile_context>
chip_gen: v6e
topology: v6e:2x2x1
jax: 0.10.0
libtpu: 0.0.40
codegen_flags: <defaults>
</compile_context>

<pallas_src>
import functools

import jax
import jax.numpy as jnp
from jax.experimental import pallas as pl
from jax.experimental.pallas import tpu as pltpu

_LANE = 128
_MAX_HW_TILE = 2048                        # lane tile for hw reduction (multiple of 128)
_TARGET_HBM_STEP_BYTES = 8 * 1024 * 1024   # target real HBM bytes read per grid step
_VMEM_INBUF_CAP_BYTES = 8 * 1024 * 1024    # cap on one lane-padded input buffer in VMEM
_VMEM_LIMIT_BYTES = 48 * 1024 * 1024       # fits v7x 64 MiB physical VMEM with headroom


def _cdiv(a: int, b: int) -> int:
    return -(-a // b)


def _round_up(x: int, m: int) -> int:
    return _cdiv(x, m) * m


def _round_down(x: int, m: int) -> int:
    return (x // m) * m


def _sublane_for(dtype) -> int:
    # Packed-sublane tile heights: (8,128) f32, (16,128) bf16, (32,128) int8/fp8.
    return {4: 8, 2: 16, 1: 32}.get(jnp.dtype(dtype).itemsize, 8)


def _partial_lane_sums_f32(x):
    """(R, C) with C a multiple of 128 -> (R, 128) f32 partial sums. Pure VPU adds."""
    _, c = x.shape
    s = x[:, :_LANE].astype(jnp.float32)
    for i in range(1, c // _LANE):
        s = s + x[:, i * _LANE:(i + 1) * _LANE].astype(jnp.float32)
    return s


def _row_sum_f32(x):
    """Per-row sum -> (R, 1) f32, with at most one cross-lane (XLU) reduce."""
    _, c = x.shape
    if c % _LANE == 0 and c > _LANE:
        return jnp.sum(_partial_lane_sums_f32(x), axis=-1, keepdims=True)
    return jnp.sum(x, axis=-1, keepdims=True, dtype=jnp.float32)


def _gap_kernel_single(x_ref, o_ref, *, inv_hw: float):
    # The whole hw range fits in one tile: reduce + scale + store in a single pass.
    o_ref[...] = (_row_sum_f32(x_ref[...]) * inv_hw).astype(o_ref.dtype)


def _gap_kernel_tiled(x_ref, o_ref, acc_ref, *, inv_hw: float, hw: int,
                      hw_tile: int, mask_tail: bool):
    k = pl.program_id(1)

    @pl.when(k == 0)
    def _init():
        acc_ref[...] = jnp.zeros_like(acc_ref)

    x = x_ref[...]
    if mask_tail:
        # The last hw tile overhangs the array; the out-of-bounds lanes of the
        # auto-DMA'd block are undefined (not zero), so mask before accumulating.
        col = jax.lax.broadcasted_iota(jnp.int32, x.shape, 1)
        x = jnp.where(col < (hw - k * hw_tile), x, jnp.zeros_like(x))

    # Steady state: pure VPU adds into the (rows, 128) f32 accumulator.
    acc_ref[...] += _partial_lane_sums_f32(x)

    @pl.when(k == pl.num_programs(1) - 1)
    def _finalize():
        # Single cross-lane reduce per row block; fold 1/hw into the final store.
        o_ref[...] = (jnp.sum(acc_ref[...], axis=-1, keepdims=True)
                      * inv_hw).astype(o_ref.dtype)


def global_avg_pool2d(x: jax.Array) -> jax.Array:
    """x: (N, C, H, W) -> (N, C); matches adaptive_avg_pool2d(x, 1).view(N, -1)."""
    N, C, H, W = x.shape
    rows, hw = N * C, H * W
    x2 = x.reshape(rows, hw)

    itemsize = jnp.dtype(x.dtype).itemsize
    sublane = _sublane_for(x.dtype)

    # --- hw tiling: never pad in HBM; ragged last tile is masked in-kernel. ---
    if hw <= _MAX_HW_TILE:
        hw_tile = hw          # block last dim == full array dim (always legal)
        num_hw = 1
    else:
        hw_tile = _MAX_HW_TILE
        num_hw = _cdiv(hw, hw_tile)
    mask_tail = (num_hw > 1) and (hw % hw_tile != 0)
    hw_tile_padded = _round_up(hw_tile, _LANE)

    # --- block_rows: target ~8 MiB of real HBM bytes per step, cap VMEM buffer. ---
    br_hbm = _TARGET_HBM_STEP_BYTES // max(1, hw_tile * itemsize)
    br_vmem = _VMEM_INBUF_CAP_BYTES // max(1, hw_tile_padded * itemsize)
    block_rows = max(sublane, _round_down(min(br_hbm, br_vmem), sublane))
    block_rows = min(block_rows, _round_up(rows, sublane))

    # Megacore guard (v7x has 2 TCs): keep >= 2 row blocks when rows allow it.
    if rows > sublane and _cdiv(rows, block_rows) < 2:
        block_rows = _round_up(_cdiv(rows, 2), sublane)
    # TODO(synk): few-rows / huge-hw regime (1 row block) could split the hw range
    # across a leading parallel axis for v7x; not done here.

    num_row_blocks = _cdiv(rows, block_rows)
    inv_hw = 1.0 / float(hw)

    if num_hw == 1:
        kernel = functools.partial(_gap_kernel_single, inv_hw=inv_hw)
        grid = (num_row_blocks,)
        in_specs = [pl.BlockSpec((block_rows, hw_tile), lambda i: (i, 0))]
        out_specs = pl.BlockSpec((block_rows, 1), lambda i: (i, 0))
        scratch_shapes = []
        dim_sem = ("parallel",)
    else:
        kernel = functools.partial(_gap_kernel_tiled, inv_hw=inv_hw, hw=hw,
                                   hw_tile=hw_tile, mask_tail=mask_tail)
        grid = (num_row_blocks, num_hw)
        in_specs = [pl.BlockSpec((block_rows, hw_tile), lambda i, k: (i, k))]
        out_specs = pl.BlockSpec((block_rows, 1), lambda i, k: (i, 0))
        scratch_shapes = [pltpu.VMEM((block_rows, _LANE), jnp.float32)]
        dim_sem = ("parallel", "arbitrary")

    out = pl.pallas_call(
        kernel,
        out_shape=jax.ShapeDtypeStruct((rows, 1), x.dtype),
        grid_spec=pltpu.PrefetchScalarGridSpec(
            num_scalar_prefetch=0,
            grid=grid,
            in_specs=in_specs,
            out_specs=out_specs,
            scratch_shapes=scratch_shapes,
        ),
        compiler_params=pltpu.CompilerParams(
            dimension_semantics=dim_sem,
            vmem_limit_bytes=_VMEM_LIMIT_BYTES,
        ),
    )(x2)

    return out.reshape(N, C)


if __name__ == "__main__":
    key = jax.random.PRNGKey(0)
    N, C, H, W = 2, 4, 16, 16
    x = jax.random.normal(key, (N, C, H, W), dtype=jnp.float32)

    out = global_avg_pool2d(x)
    jax.block_until_ready(out)

    # Reference check against plain JAX (same semantics as the PyTorch module).
    ref = jnp.mean(x, axis=(2, 3))
    assert out.shape == (N, C), out.shape
    assert jnp.allclose(out, ref, atol=1e-5, rtol=1e-5), "mismatch vs reference"

    print("KERNEL_OK")
</pallas_src>

<mosaic_0001>
module attributes {stable_mosaic.version = 11 : i64} {
  func.func @_gap_kernel_single(%arg0: i32, %arg1: memref<8x256xf32, #tpu.memory_space<vmem>>, %arg2: memref<8x1xf32, #tpu.memory_space<vmem>>) attributes {dimension_semantics = [#tpu.dimension_semantics<parallel>], iteration_bounds = array<i64: 1>, scalar_prefetch = 0 : i64, scratch_operands = 0 : i64, tpu.core_type = #tpu.core_type<tc>, window_params = [{transform_indices = @transform_0, window_bounds = array<i64: 8, 256>}, {transform_indices = @transform_1, window_bounds = array<i64: 8, 1>}]} {
    %c0 = arith.constant 0 : index
    %c0_0 = arith.constant 0 : index
    %0 = vector.load %arg1[%c0, %c0_0] : memref<8x256xf32, #tpu.memory_space<vmem>>, vector<8x256xf32>
    %1 = vector.extract_strided_slice %0 {offsets = [0, 0], sizes = [8, 128], strides = [1, 1]} : vector<8x256xf32> to vector<8x128xf32>
    %2 = vector.extract_strided_slice %0 {offsets = [0, 128], sizes = [8, 128], strides = [1, 1]} : vector<8x256xf32> to vector<8x128xf32>
    %3 = arith.addf %1, %2 : vector<8x128xf32>
    %cst = arith.constant dense<0.000000e+00> : vector<8xf32>
    %4 = vector.multi_reduction <add>, %3, %cst [1] : vector<8x128xf32> to vector<8xf32>
    %5 = vector.shape_cast %4 : vector<8xf32> to vector<8x1xf32>
    %cst_1 = arith.constant 3.906250e-03 : f32
    %6 = vector.broadcast %cst_1 : f32 to vector<8x1xf32>
    %7 = arith.mulf %5, %6 : vector<8x1xf32>
    %c0_2 = arith.constant 0 : index
    %c0_3 = arith.constant 0 : index
    %8 = vector.load %arg2[%c0_2, %c0_3] : memref<8x1xf32, #tpu.memory_space<vmem>>, vector<8x1xf32>
    tpu.vector_store %arg2[%c0_2, %c0_3], %7 {strides = array<i32>} : memref<8x1xf32, #tpu.memory_space<vmem>>, vector<8x1xf32>,
    return
  }
  func.func @transform_0(%arg0: i32) -> (i32, i32) {
    %c0_i32 = arith.constant 0 : i32
    %c0_i32_0 = arith.constant 0 : i32
    return %arg0, %c0_i32 : i32, i32
  }
  func.func @transform_1(%arg0: i32) -> (i32, i32) {
    %c0_i32 = arith.constant 0 : i32
    %c0_i32_0 = arith.constant 0 : i32
    return %arg0, %c0_i32 : i32, i32
  }
}

</mosaic_0001>

<llo_original>
// kernel: tpu_custom_call.1
$region0: #{tpu_custom_call.1}
  #allocation0 [shape = 'u32[]', space=smem, size = 0x4, offset = 0x4, fixed_abs, tag = 'smem constant byte address 0x4 - core index']
  #allocation1 [shape = 'u32[144,128]{1,0:T(1,128)}', space=vmem, size = 0x12000, scoped, tag = 'internal scratch']
  %s0 = inlined_call_operand.hbm [shape: f32[8,256], index: 0, kind: input, shape index: {}]
  %s1 = inlined_call_operand.vmem [shape: f32[8,1], index: 1, kind: output, shape index: {}]
  %s2 = sld [smem:[#allocation0]]
  $region18: #{tpu_custom_call.1} parent=0
    _
  %s4 = ssub.s32 1, %s2
  %s5 = scalar_select 0, %s4, %s2
  $region1: #{tpu_custom_call.1} parent=0
    #allocation2 [shape = 'u8[8192]{0}', space=vmem, size = 0x2000, scoped, tag = 'input window, operand 0, single buffered']
    #allocation3 [shape = 's32[1]{0}', space=sflag, size = 0x4, scoped, tag = 'scoped memory for tpu_custom_call.1']
    %6 = vsyncpa [#allocation3], 0
    // Predicated region
    $region2: #{tpu_custom_call.1} parent=1 // pred_check
      _
    $region3: #{tpu_custom_call.1} parent=1 // pred_check_branch
      %8 = sbr.rel (0) target = $region5
    $region4: #{tpu_custom_call.1} parent=1 // pred_region
      %s10 = ssub.s32 256, 256
      %11 = vsyncadd [#allocation3], %s10
      %s13 = sshll.u32 [#allocation2], 4
      %s14 = int_to_ptr.vmem [resolvable:$true] %s13
      %16 = dma.hbm_to_vmem [thread:$0]  %s0, 256, %s14, [#allocation3]
    $region5: #{tpu_custom_call.1} parent=1 // pred_fallthru
      _
    // Predicated region
    $region6: #{tpu_custom_call.1} parent=1 // pred_check
      _
    $region7: #{tpu_custom_call.1} parent=1 // pred_check_branch
      %18 = sbr.rel (0) target = $region9
    $region8: #{tpu_custom_call.1} parent=1 // pred_region
      %19 = dma.done [#allocation3], 256
    $region9: #{tpu_custom_call.1} parent=1 // pred_fallthru
      _
    %v20 = vld [vmem:[#allocation2] sm:$0xff]
    %v21 = vld [vmem:[#allocation2 + $0x8] sm:$0xff]
    %v22 = vadd.f32 %v20, %v21
    %23 = vadd.xlane.f32.xlu0 %v22
    %v24 = vpop.xlane.xlu0 %23
    %v25 = vmul.f32 %v24, 0.00390625
    %vm26 = vcmask 7168
    %27 = vst.msk [vmem:[%s1] sm:$0xff] %vm26, %v25
    // Predicated region
    $region10: #{tpu_custom_call.1} parent=1 // pred_check
      _
    $region11: #{tpu_custom_call.1} parent=1 // pred_check_branch
      %29 = sbr.rel (0) target = $region13
    $region12: #{tpu_custom_call.1} parent=1 // pred_region
      _
    $region13: #{tpu_custom_call.1} parent=1 // pred_fallthru
      _
    // Predicated region
    $region14: #{tpu_custom_call.1} parent=1 // pred_check
      _
    $region15: #{tpu_custom_call.1} parent=1 // pred_check_branch
      %31 = sbr.rel (0) target = $region17
    $region16: #{tpu_custom_call.1} parent=1 // pred_region
      _
    $region17: #{tpu_custom_call.1} parent=1 // pred_fallthru
      _
    %32 = vsyncpa [#allocation3], 1

</llo_original>
